<compile_context>
chip_gen: v7x
topology: tpu7x:2x2x1
jax: 0.10.0
libtpu: 0.0.40
codegen_flags: <defaults>
</compile_context>

<pallas_src>
import functools
import math

import jax
import jax.numpy as jnp
from jax.experimental import pallas as pl
from jax.experimental.pallas import tpu as pltpu


def _round_up(a, b):
    return -(-a // b) * b


# ----------------------------------------------------------------------------
# Fused kernel: conv1(+BN) -> GELU -> conv2(+BN).  Grid = (batch, 4 phases).
# ----------------------------------------------------------------------------
def _patch_embed_kernel(cols_ref, w1_ref, b1_ref, w2f_ref, b2_ref, o_ref,
                        h_scr, op_scr, *, C1, C2, H2, W2, P):
    # cols_ref: (1, 1, M, 9*Cin) bf16 -- conv1 im2col for this parity phase
    # w1_ref  : (9*Cin, C1)      bf16 -- BN-folded conv1 weight
    # b1_ref  : (1, C1)          f32  -- BN-folded conv1 bias
    # w2f_ref : (1, 4*C1, C2)    bf16 -- K-fused conv2 weight for this phase
    #                                    (rows of unused shift slots are zero)
    # b2_ref  : (1, C2)          f32  -- BN-folded conv2 bias
    # o_ref   : (1, M, C2)       f32  -- output accumulator, resident across phases
    # h_scr   : (P + M, C1)      bf16 -- GELU(conv1) with P leading zero rows
    # op_scr  : (M, 4*C1)        bf16 -- conv2 shift-fused operand
    p = pl.program_id(1)
    M = H2 * W2

    @pl.when(p == 0)
    def _init():
        # Zero prefix realises conv2's top/left zero padding for shifted slices.
        h_scr[0:P, :] = jnp.zeros((P, C1), jnp.bfloat16)
        # Accumulator initialised with the fused BN2 bias (no bias stream).
        o_ref[0] = jnp.broadcast_to(b2_ref[...], (M, C2))

    # ---- conv1 (+ folded BN): one deep matmul, K = 9*Cin --------------------
    acc1 = jnp.dot(cols_ref[0, 0], w1_ref[...],
                   preferred_element_type=jnp.float32) + b1_ref[...]

    # ---- GELU (tanh approximation -> EUP slot; validated vs exact erf) ------
    c0 = jnp.float32(math.sqrt(2.0 / math.pi))
    h = 0.5 * acc1 * (1.0 + jnp.tanh(c0 * (acc1 + 0.044715 * acc1 * acc1 * acc1)))
    hb = h.astype(jnp.bfloat16)

    # ---- build the conv2 operand: 4 shifted copies, shifts (da, db) in {0,-1}
    h_scr[P:P + M, :] = hb
    left_edge = (jax.lax.broadcasted_iota(jnp.int32, (M, 1), 0) % W2) == 0

    op_scr[:, 0:C1] = hb                                         # ( 0,  0)
    s01 = h_scr[P - 1:P - 1 + M, :]                              # ( 0, -1)
    op_scr[:, C1:2 * C1] = jnp.where(left_edge, jnp.zeros_like(s01), s01)
    op_scr[:, 2 * C1:3 * C1] = h_scr[P - W2:P - W2 + M, :]       # (-1,  0)
    s11 = h_scr[P - W2 - 1:P - W2 - 1 + M, :]                    # (-1, -1)
    op_scr[:, 3 * C1:4 * C1] = jnp.where(left_edge, jnp.zeros_like(s11), s11)

    # ---- conv2 (+ folded BN): one deep matmul per phase, K = 4*C1 -----------
    o_ref[0] = o_ref[0] + jnp.dot(op_scr[...], w2f_ref[0],
                                  preferred_element_type=jnp.float32)


# ----------------------------------------------------------------------------
# PatchEmbed forward (NCHW in / NCHW out), BN folded, single fused pallas_call.
# ----------------------------------------------------------------------------
def patch_embed_forward(x_nchw, params, *, eps=1e-5):
    N, Cin, H, W = x_nchw.shape
    C1 = params["w1"].shape[0]
    C2 = params["w2"].shape[0]
    assert H % 4 == 0 and W % 4 == 0, "resolution must be divisible by 4"
    H2, W2 = H // 4, W // 4
    M = H2 * W2
    P = max(8, _round_up(W2 + 1, 8))          # zero-prefix rows, >= W2 + 1

    # ---- fold eval-mode BatchNorm into conv weights/biases (Conv2d_BN.fuse) -
    s1 = params["bn1_w"] * jax.lax.rsqrt(params["bn1_var"] + eps)
    w1 = params["w1"] * s1[:, None, None, None]                  # (C1, Cin, 3, 3)
    b1 = (params["bn1_b"] - params["bn1_mean"] * s1).reshape(1, C1).astype(jnp.float32)
    s2 = params["bn2_w"] * jax.lax.rsqrt(params["bn2_var"] + eps)
    w2 = params["w2"] * s2[:, None, None, None]                  # (C2, C1, 3, 3)
    b2 = (params["bn2_b"] - params["bn2_mean"] * s2).reshape(1, C2).astype(jnp.float32)

    # Conv1 weight as a (9*Cin, C1) matrix, rows ordered (kh, kw, cin).
    w1_mat = jnp.transpose(w1, (2, 3, 1, 0)).reshape(9 * Cin, C1).astype(jnp.bfloat16)

    # Conv2 weight regrouped per conv1 parity phase and K-fused into the four
    # shift slots [(0,0), (0,-1), (-1,0), (-1,-1)]; unused slots get zero rows.
    w2_t = jnp.transpose(w2, (2, 3, 1, 0))                       # (kh, kw, C1, C2)
    zero = jnp.zeros((C1, C2), jnp.float32)
    w2f_list = []
    for pr in range(2):
        for pc in range(2):
            kh0 = 1 if pr == 0 else 2                            # row tap with da = 0
            kw0 = 1 if pc == 0 else 2                            # col tap with db = 0
            slots = [
                w2_t[kh0, kw0],                                  # ( 0,  0) always used
                w2_t[kh0, 0] if pc == 1 else zero,               # ( 0, -1) kw = 0
                w2_t[0, kw0] if pr == 1 else zero,               # (-1,  0) kh = 0
                w2_t[0, 0] if (pr == 1 and pc == 1) else zero,   # (-1, -1) kh = kw = 0
            ]
            w2f_list.append(jnp.concatenate(slots, axis=0))      # (4*C1, C2)
    w2f = jnp.stack(w2f_list, axis=0).astype(jnp.bfloat16)       # (4, 4*C1, C2)

    # ---- conv1 im2col per parity phase (wrapper side, lane-dense minor dim) -
    x = jnp.transpose(x_nchw, (0, 2, 3, 1)).astype(jnp.bfloat16)  # NHWC, bf16
    xpad = jnp.pad(x, ((0, 0), (1, 1), (1, 1), (0, 0)))
    phases = []
    for pr in range(2):
        for pc in range(2):
            taps = []
            for kh in range(3):
                for kw in range(3):
                    t = xpad[:, 2 * pr + kh::4, 2 * pc + kw::4, :]
                    taps.append(t[:, :H2, :W2, :])               # (N, H2, W2, Cin)
            phases.append(jnp.concatenate(taps, axis=-1).reshape(N, 1, M, 9 * Cin))
    cols = jnp.concatenate(phases, axis=1)                       # (N, 4, M, 9*Cin)

    kernel = functools.partial(_patch_embed_kernel,
                               C1=C1, C2=C2, H2=H2, W2=W2, P=P)

    # Explicit VMEM budget: double-buffered blocks + scratch, padded, + headroom.
    lane, sub = 128, 16
    blk_bytes = 2 * (_round_up(M, sub) * _round_up(9 * Cin, lane) * 2        # cols
                     + _round_up(9 * Cin, sub) * _round_up(C1, lane) * 2     # w1
                     + 8 * _round_up(C1, lane) * 4                           # b1
                     + _round_up(4 * C1, sub) * _round_up(C2, lane) * 2      # w2f
                     + 8 * _round_up(C2, lane) * 4                           # b2
                     + _round_up(M, 8) * _round_up(C2, lane) * 4)            # out
    scr_bytes = (_round_up(P + M, sub) * _round_up(C1, lane) * 2
                 + _round_up(M, sub) * _round_up(4 * C1, lane) * 2)
    vmem_limit = int(min(max(2 * (blk_bytes + scr_bytes), 32 << 20), 100 << 20))

    flops = (2 * N * 4 * M * (9 * Cin) * C1          # conv1, 4 phases
             + 2 * N * 4 * M * (4 * C1) * C2)        # conv2, 4 fused matmuls
    transcendentals = N * 4 * M * C1                 # tanh per conv1 output elem
    bytes_accessed = (cols.size * 2 + w1_mat.size * 2 + w2f.size * 2
                      + b1.size * 4 + b2.size * 4 + N * M * C2 * 4)

    out = pl.pallas_call(
        kernel,
        out_shape=jax.ShapeDtypeStruct((N, M, C2), jnp.float32),
        grid=(N, 4),
        in_specs=[
            pl.BlockSpec((1, 1, M, 9 * Cin), lambda b, p: (b, p, 0, 0)),
            pl.BlockSpec((9 * Cin, C1), lambda b, p: (0, 0)),
            pl.BlockSpec((1, C1), lambda b, p: (0, 0)),
            pl.BlockSpec((1, 4 * C1, C2), lambda b, p: (p, 0, 0)),
            pl.BlockSpec((1, C2), lambda b, p: (0, 0)),
        ],
        out_specs=pl.BlockSpec((1, M, C2), lambda b, p: (b, 0, 0)),
        scratch_shapes=[
            pltpu.VMEM((P + M, C1), jnp.bfloat16),     # GELU(conv1) + zero prefix
            pltpu.VMEM((M, 4 * C1), jnp.bfloat16),     # K-fused conv2 operand
        ],
        compiler_params=pltpu.CompilerParams(
            dimension_semantics=("parallel", "arbitrary"),
            vmem_limit_bytes=vmem_limit),
        cost_estimate=pl.CostEstimate(flops=flops,
                                      transcendentals=transcendentals,
                                      bytes_accessed=bytes_accessed),
    )(cols, w1_mat, b1, w2f, b2)

    out = out.reshape(N, H2, W2, C2)
    return jnp.transpose(out, (0, 3, 1, 2))            # NHWC -> NCHW


# ----------------------------------------------------------------------------
# Plain-JAX reference (exact-erf GELU, matches torch) and parameter init.
# ----------------------------------------------------------------------------
def _reference_forward(x_nchw, params, *, eps=1e-5):
    def conv_bn(x, w, g, b, m, v):
        s = g * jax.lax.rsqrt(v + eps)
        y = jax.lax.conv_general_dilated(
            x, w * s[:, None, None, None], window_strides=(2, 2),
            padding=((1, 1), (1, 1)),
            dimension_numbers=("NCHW", "OIHW", "NCHW"))
        return y + (b - m * s)[None, :, None, None]

    y = conv_bn(x_nchw, params["w1"], params["bn1_w"], params["bn1_b"],
                params["bn1_mean"], params["bn1_var"])
    y = jax.nn.gelu(y, approximate=False)
    y = conv_bn(y, params["w2"], params["bn2_w"], params["bn2_b"],
                params["bn2_mean"], params["bn2_var"])
    return y


def init_params(key, in_chans, embed_dim):
    n = embed_dim
    ks = jax.random.split(key, 8)
    # Conv2d_BN: conv is bias-free; BN params randomised mildly so the eval-mode
    # BN folding is actually exercised by the numeric check.
    return {
        "w1": jax.random.normal(ks[0], (n // 2, in_chans, 3, 3), jnp.float32) * 0.05,
        "bn1_w": 1.0 + 0.1 * jax.random.normal(ks[1], (n // 2,), jnp.float32),
        "bn1_b": 0.05 * jax.random.normal(ks[2], (n // 2,), jnp.float32),
        "bn1_mean": 0.05 * jax.random.normal(ks[3], (n // 2,), jnp.float32),
        "bn1_var": 1.0 + 0.2 * jax.random.uniform(ks[4], (n // 2,), jnp.float32),
        "w2": jax.random.normal(ks[5], (n, n // 2, 3, 3), jnp.float32) * 0.05,
        "bn2_w": 1.0 + 0.1 * jax.random.normal(ks[6], (n,), jnp.float32),
        "bn2_b": 0.05 * jax.random.normal(ks[7], (n,), jnp.float32),
        "bn2_mean": jnp.zeros((n,), jnp.float32),
        "bn2_var": jnp.ones((n,), jnp.float32),
    }


def _check(batch, in_chans, embed_dim, resolution, seed):
    key = jax.random.PRNGKey(seed)
    kx, kp = jax.random.split(key)
    x = jax.random.normal(kx, (batch, in_chans, resolution, resolution),
                          jnp.float32)
    params = init_params(kp, in_chans, embed_dim)

    out = jax.jit(patch_embed_forward)(x, params)
    out = jax.block_until_ready(out)

    expected_shape = (batch, embed_dim, resolution // 4, resolution // 4)
    assert out.shape == expected_shape, (out.shape, expected_shape)
    assert bool(jnp.all(jnp.isfinite(out)))

    # bf16 MXU operands + tanh-GELU vs exact-erf reference: loose tolerance.
    ref = _reference_forward(x, params)
    max_err = float(jnp.max(jnp.abs(out - ref)))
    assert max_err < 5e-2, f"mismatch vs reference: max abs err = {max_err}"


if __name__ == "__main__":
    # Small shapes consistent with the module:
    #   in_chans=4, embed_dim=32, resolution=16, batch=2
    #   x: (2, 4, 16, 16) NCHW  ->  output: (2, 32, 4, 4) NCHW
    _check(batch=2, in_chans=4, embed_dim=32, resolution=16, seed=0)
    # Second shape with W2 > 7 and Cin=3: exercises the zero-prefix padding and
    # non-sublane-aligned W2 (the regime where the old pad_rows=8 was wrong).
    _check(batch=1, in_chans=3, embed_dim=64, resolution=40, seed=1)

    print("KERNEL_OK")
</pallas_src>

<mosaic_0001>
module attributes {stable_mosaic.version = 11 : i64} {
  func.func @_patch_embed_kernel(%arg0: i32, %arg1: i32, %arg2: memref<1x1x16x36xbf16, #tpu.memory_space<vmem>>, %arg3: memref<36x16xbf16, #tpu.memory_space<vmem>>, %arg4: memref<1x16xf32, #tpu.memory_space<vmem>>, %arg5: memref<1x64x32xbf16, #tpu.memory_space<vmem>>, %arg6: memref<1x32xf32, #tpu.memory_space<vmem>>, %arg7: memref<1x16x32xf32, #tpu.memory_space<vmem>>, %arg8: memref<24x16xbf16, #tpu.memory_space<vmem>>, %arg9: memref<16x64xbf16, #tpu.memory_space<vmem>>) attributes {dimension_semantics = [#tpu.dimension_semantics<parallel>, #tpu.dimension_semantics<arbitrary>], iteration_bounds = array<i64: 2, 4>, scalar_prefetch = 0 : i64, scratch_operands = 2 : i64, tpu.core_type = #tpu.core_type<tc>, window_params = [{transform_indices = @transform_0, window_bounds = array<i64: 1, 1, 16, 36>}, {pipeline_mode = #tpu.pipeline_mode<synchronous>, transform_indices = @transform_1, window_bounds = array<i64: 36, 16>}, {pipeline_mode = #tpu.pipeline_mode<synchronous>, transform_indices = @transform_2, window_bounds = array<i64: 1, 16>}, {transform_indices = @transform_3, window_bounds = array<i64: 1, 64, 32>}, {pipeline_mode = #tpu.pipeline_mode<synchronous>, transform_indices = @transform_4, window_bounds = array<i64: 1, 32>}, {transform_indices = @transform_5, window_bounds = array<i64: 1, 16, 32>}]} {
    %c0_i32 = arith.constant 0 : i32
    %0 = arith.cmpi eq, %arg1, %c0_i32 : i32
    %1 = arith.extui %0 : i1 to i32
    %c0_i32_0 = arith.constant 0 : i32
    %2 = arith.cmpi ne, %1, %c0_i32_0 : i32
    scf.if %2 {
      %cst_40 = arith.constant 0.000000e+00 : bf16
      %69 = vector.broadcast %cst_40 : bf16 to vector<8x16xbf16>
      %c0_41 = arith.constant 0 : index
      %c0_42 = arith.constant 0 : index
      %70 = vector.load %arg8[%c0_41, %c0_42] : memref<24x16xbf16, #tpu.memory_space<vmem>>, vector<8x16xbf16>
      tpu.vector_store %arg8[%c0_41, %c0_42], %69 {strides = array<i32>} : memref<24x16xbf16, #tpu.memory_space<vmem>>, vector<8x16xbf16>,
      %c0_43 = arith.constant 0 : index
      %c0_44 = arith.constant 0 : index
      %71 = vector.load %arg6[%c0_43, %c0_44] : memref<1x32xf32, #tpu.memory_space<vmem>>, vector<1x32xf32>
      %72 = vector.shape_cast %71 : vector<1x32xf32> to vector<1x32xf32>
      %73 = vector.broadcast %72 : vector<1x32xf32> to vector<16x32xf32>
      %c0_45 = arith.constant 0 : index
      %c0_46 = arith.constant 0 : index
      %c0_47 = arith.constant 0 : index
      %74 = vector.load %arg7[%c0_45, %c0_46, %c0_47] : memref<1x16x32xf32, #tpu.memory_space<vmem>>, vector<1x16x32xf32>
      %75 = vector.shape_cast %74 : vector<1x16x32xf32> to vector<16x32xf32>
      %76 = vector.shape_cast %73 : vector<16x32xf32> to vector<1x16x32xf32>
      tpu.vector_store %arg7[%c0_45, %c0_46, %c0_47], %76 {strides = array<i32>} : memref<1x16x32xf32, #tpu.memory_space<vmem>>, vector<1x16x32xf32>,
    } else {
    }
    %c0 = arith.constant 0 : index
    %c0_1 = arith.constant 0 : index
    %c0_2 = arith.constant 0 : index
    %c0_3 = arith.constant 0 : index
    %3 = vector.load %arg2[%c0, %c0_1, %c0_2, %c0_3] : memref<1x1x16x36xbf16, #tpu.memory_space<vmem>>, vector<1x1x16x36xbf16>
    %4 = vector.shape_cast %3 : vector<1x1x16x36xbf16> to vector<16x36xbf16>
    %c0_4 = arith.constant 0 : index
    %c0_5 = arith.constant 0 : index
    %5 = vector.load %arg3[%c0_4, %c0_5] : memref<36x16xbf16, #tpu.memory_space<vmem>>, vector<36x16xbf16>
    %cst = arith.constant dense<0.000000e+00> : vector<16x16xf32>
    %6 = tpu.matmul %4, %5, %cst {dimension_numbers = #tpu.dot_dimension_numbers<[1], [0], [0], [1], [0, 0, 1, 1], [], []>} : vector<16x36xbf16>, vector<36x16xbf16>, vector<16x16xf32> -> vector<16x16xf32>
    %c0_6 = arith.constant 0 : index
    %c0_7 = arith.constant 0 : index
    %7 = vector.load %arg4[%c0_6, %c0_7] : memref<1x16xf32, #tpu.memory_space<vmem>>, vector<1x16xf32>
    %8 = vector.broadcast %7 : vector<1x16xf32> to vector<16x16xf32>
    %9 = arith.addf %6, %8 : vector<16x16xf32>
    %cst_8 = arith.constant 5.000000e-01 : f32
    %10 = vector.broadcast %cst_8 : f32 to vector<16x16xf32>
    %11 = arith.mulf %10, %9 : vector<16x16xf32>
    %cst_9 = arith.constant 4.471500e-02 : f32
    %12 = vector.broadcast %cst_9 : f32 to vector<16x16xf32>
    %13 = arith.mulf %12, %9 : vector<16x16xf32>
    %14 = arith.mulf %13, %9 : vector<16x16xf32>
    %15 = arith.mulf %14, %9 : vector<16x16xf32>
    %16 = arith.addf %9, %15 : vector<16x16xf32>
    %cst_10 = arith.constant 0.797884583 : f32
    %17 = vector.broadcast %cst_10 : f32 to vector<16x16xf32>
    %18 = arith.mulf %17, %16 : vector<16x16xf32>
    %19 = math.tanh %18 : vector<16x16xf32>
    %cst_11 = arith.constant 1.000000e+00 : f32
    %20 = vector.broadcast %cst_11 : f32 to vector<16x16xf32>
    %21 = arith.addf %20, %19 : vector<16x16xf32>
    %22 = arith.mulf %11, %21 : vector<16x16xf32>
    %23 = arith.truncf %22 : vector<16x16xf32> to vector<16x16xbf16>
    %c8 = arith.constant 8 : index
    %c0_12 = arith.constant 0 : index
    %24 = vector.load %arg8[%c8, %c0_12] : memref<24x16xbf16, #tpu.memory_space<vmem>>, vector<16x16xbf16>
    tpu.vector_store %arg8[%c8, %c0_12], %23 {strides = array<i32>} : memref<24x16xbf16, #tpu.memory_space<vmem>>, vector<16x16xbf16>,
    %25 = tpu.iota {dimensions = array<i32: 0>} : vector<16x1xi32>
    %c4_i32 = arith.constant 4 : i32
    %c0_i32_13 = arith.constant 0 : i32
    %26 = arith.cmpi eq, %c4_i32, %c0_i32_13 : i32
    %c1_i32 = arith.constant 1 : i32
    %27 = arith.select %26, %c1_i32, %c4_i32 : i32
    %28 = vector.broadcast %27 : i32 to vector<16x1xi32>
    %29 = arith.remsi %25, %28 : vector<16x1xi32>
    %c0_i32_14 = arith.constant 0 : i32
    %30 = vector.broadcast %c0_i32_14 : i32 to vector<16x1xi32>
    %31 = arith.cmpi ne, %29, %30 : vector<16x1xi32>
    %c0_i32_15 = arith.constant 0 : i32
    %32 = vector.broadcast %c0_i32_15 : i32 to vector<16x1xi32>
    %33 = arith.cmpi slt, %29, %32 : vector<16x1xi32>
    %c0_i32_16 = arith.constant 0 : i32
    %34 = arith.cmpi slt, %27, %c0_i32_16 : i32
    %35 = vector.broadcast %34 : i1 to vector<16x1xi1>
    %36 = vector.broadcast %35 : vector<16x1xi1> to vector<16x1xi1>
    %37 = arith.xori %33, %36 : vector<16x1xi1>
    %38 = arith.andi %37, %31 : vector<16x1xi1>
    %39 = vector.broadcast %27 : i32 to vector<16x1xi32>
    %40 = arith.addi %29, %39 : vector<16x1xi32>
    %41 = arith.select %38, %40, %29 : vector<16x1xi1>, vector<16x1xi32>
    %c0_i32_17 = arith.constant 0 : i32
    %42 = vector.broadcast %c0_i32_17 : i32 to vector<16x1xi32>
    %43 = arith.cmpi eq, %41, %42 : vector<16x1xi32>
    %c0_18 = arith.constant 0 : index
    %c0_19 = arith.constant 0 : index
    %44 = vector.load %arg9[%c0_18, %c0_19] : memref<16x64xbf16, #tpu.memory_space<vmem>>, vector<16x16xbf16>
    tpu.vector_store %arg9[%c0_18, %c0_19], %23 {strides = array<i32>} : memref<16x64xbf16, #tpu.memory_space<vmem>>, vector<16x16xbf16>,
    %c7 = arith.constant 7 : index
    %c0_20 = arith.constant 0 : index
    %45 = vector.load %arg8[%c7, %c0_20] : memref<24x16xbf16, #tpu.memory_space<vmem>>, vector<16x16xbf16>
    %cst_21 = arith.constant 0.000000e+00 : bf16
    %46 = vector.broadcast %cst_21 : bf16 to vector<16x16xbf16>
    %47 = vector.shape_cast %43 : vector<16x1xi1> to vector<16x1xi1>
    %48 = vector.broadcast %47 : vector<16x1xi1> to vector<16x16xi1>
    %49 = arith.select %48, %46, %45 : vector<16x16xi1>, vector<16x16xbf16>
    %c0_22 = arith.constant 0 : index
    %c16 = arith.constant 16 : index
    %50 = vector.load %arg9[%c0_22, %c16] : memref<16x64xbf16, #tpu.memory_space<vmem>>, vector<16x16xbf16>
    tpu.vector_store %arg9[%c0_22, %c16], %49 {strides = array<i32>} : memref<16x64xbf16, #tpu.memory_space<vmem>>, vector<16x16xbf16>,
    %c4 = arith.constant 4 : index
    %c0_23 = arith.constant 0 : index
    %51 = vector.load %arg8[%c4, %c0_23] : memref<24x16xbf16, #tpu.memory_space<vmem>>, vector<16x16xbf16>
    %c0_24 = arith.constant 0 : index
    %c32 = arith.constant 32 : index
    %52 = vector.load %arg9[%c0_24, %c32] : memref<16x64xbf16, #tpu.memory_space<vmem>>, vector<16x16xbf16>
    tpu.vector_store %arg9[%c0_24, %c32], %51 {strides = array<i32>} : memref<16x64xbf16, #tpu.memory_space<vmem>>, vector<16x16xbf16>,
    %c3 = arith.constant 3 : index
    %c0_25 = arith.constant 0 : index
    %53 = vector.load %arg8[%c3, %c0_25] : memref<24x16xbf16, #tpu.memory_space<vmem>>, vector<16x16xbf16>
    %cst_26 = arith.constant 0.000000e+00 : bf16
    %54 = vector.broadcast %cst_26 : bf16 to vector<16x16xbf16>
    %55 = vector.shape_cast %43 : vector<16x1xi1> to vector<16x1xi1>
    %56 = vector.broadcast %55 : vector<16x1xi1> to vector<16x16xi1>
    %57 = arith.select %56, %54, %53 : vector<16x16xi1>, vector<16x16xbf16>
    %c0_27 = arith.constant 0 : index
    %c48 = arith.constant 48 : index
    %58 = vector.load %arg9[%c0_27, %c48] : memref<16x64xbf16, #tpu.memory_space<vmem>>, vector<16x16xbf16>
    tpu.vector_store %arg9[%c0_27, %c48], %57 {strides = array<i32>} : memref<16x64xbf16, #tpu.memory_space<vmem>>, vector<16x16xbf16>,
    %c0_28 = arith.constant 0 : index
    %c0_29 = arith.constant 0 : index
    %c0_30 = arith.constant 0 : index
    %59 = vector.load %arg7[%c0_28, %c0_29, %c0_30] : memref<1x16x32xf32, #tpu.memory_space<vmem>>, vector<1x16x32xf32>
    %60 = vector.shape_cast %59 : vector<1x16x32xf32> to vector<16x32xf32>
    %c0_31 = arith.constant 0 : index
    %c0_32 = arith.constant 0 : index
    %61 = vector.load %arg9[%c0_31, %c0_32] : memref<16x64xbf16, #tpu.memory_space<vmem>>, vector<16x64xbf16>
    %c0_33 = arith.constant 0 : index
    %c0_34 = arith.constant 0 : index
    %c0_35 = arith.constant 0 : index
    %62 = vector.load %arg5[%c0_33, %c0_34, %c0_35] : memref<1x64x32xbf16, #tpu.memory_space<vmem>>, vector<1x64x32xbf16>
    %63 = vector.shape_cast %62 : vector<1x64x32xbf16> to vector<64x32xbf16>
    %cst_36 = arith.constant dense<0.000000e+00> : vector<16x32xf32>
    %64 = tpu.matmul %61, %63, %cst_36 {dimension_numbers = #tpu.dot_dimension_numbers<[1], [0], [0], [1], [0, 0, 1, 1], [], []>} : vector<16x64xbf16>, vector<64x32xbf16>, vector<16x32xf32> -> vector<16x32xf32>
    %65 = arith.addf %60, %64 : vector<16x32xf32>
    %c0_37 = arith.constant 0 : index
    %c0_38 = arith.constant 0 : index
    %c0_39 = arith.constant 0 : index
    %66 = vector.load %arg7[%c0_37, %c0_38, %c0_39] : memref<1x16x32xf32, #tpu.memory_space<vmem>>, vector<1x16x32xf32>
    %67 = vector.shape_cast %66 : vector<1x16x32xf32> to vector<16x32xf32>
    %68 = vector.shape_cast %65 : vector<16x32xf32> to vector<1x16x32xf32>
    tpu.vector_store %arg7[%c0_37, %c0_38, %c0_39], %68 {strides = array<i32>} : memref<1x16x32xf32, #tpu.memory_space<vmem>>, vector<1x16x32xf32>,
    return
  }
  func.func @transform_0(%arg0: i32, %arg1: i32) -> (i32, i32, i32, i32) {
    %c0_i32 = arith.constant 0 : i32
    %c0_i32_0 = arith.constant 0 : i32
    %c0_i32_1 = arith.constant 0 : i32
    return %arg0, %arg1, %c0_i32, %c0_i32_0 : i32, i32, i32, i32
  }
  func.func @transform_1(%arg0: i32, %arg1: i32) -> (i32, i32) {
    %c0_i32 = arith.constant 0 : i32
    %c0_i32_0 = arith.constant 0 : i32
    %c0_i32_1 = arith.constant 0 : i32
    return %c0_i32, %c0_i32_0 : i32, i32
  }
  func.func @transform_2(%arg0: i32, %arg1: i32) -> (i32, i32) {
    %c0_i32 = arith.constant 0 : i32
    %c0_i32_0 = arith.constant 0 : i32
    %c0_i32_1 = arith.constant 0 : i32
    return %c0_i32, %c0_i32_0 : i32, i32
  }
  func.func @transform_3(%arg0: i32, %arg1: i32) -> (i32, i32, i32) {
    %c0_i32 = arith.constant 0 : i32
    %c0_i32_0 = arith.constant 0 : i32
    %c0_i32_1 = arith.constant 0 : i32
    return %arg1, %c0_i32, %c0_i32_0 : i32, i32, i32
  }
  func.func @transform_4(%arg0: i32, %arg1: i32) -> (i32, i32) {
    %c0_i32 = arith.constant 0 : i32
    %c0_i32_0 = arith.constant 0 : i32
    %c0_i32_1 = arith.constant 0 : i32
    return %c0_i32, %c0_i32_0 : i32, i32
  }
  func.func @transform_5(%arg0: i32, %arg1: i32) -> (i32, i32, i32) {
    %c0_i32 = arith.constant 0 : i32
    %c0_i32_0 = arith.constant 0 : i32
    %c0_i32_1 = arith.constant 0 : i32
    return %arg0, %c0_i32, %c0_i32_0 : i32, i32, i32
  }
}

</mosaic_0001>

<llo_original>
// kernel: patch_embed_forward.1
$region0: #{patch_embed_forward.1}
  #allocation0 [shape = 'u32[]', space=smem, size = 0x4, offset = 0x4, fixed_abs, tag = 'smem constant byte address 0x4 - core index']
  #allocation1 [shape = 'u32[144,128]{1,0:T(1,128)}', space=vmem, size = 0x12000, scoped, tag = 'internal scratch']
  #allocation2 [shape = 'bf16[24,16]{1,0:T(8,128)(2,1)}', space=vmem, size = 0x1800, scoped, tag = 'scratch operand']
  #allocation3 [shape = 'bf16[16,64]{1,0:T(16,128)(2,1)}', space=vmem, size = 0x1000, scoped, tag = 'scratch operand']
  %s0 = inlined_call_operand.vmem [shape: bf16[2,4,16,36], index: 0, kind: input, shape index: {}]
  %s1 = inlined_call_operand.vmem [shape: bf16[36,16], index: 1, kind: input, shape index: {}]
  %s2 = inlined_call_operand.vmem [shape: f32[1,16], index: 2, kind: input, shape index: {}]
  %s3 = inlined_call_operand.vmem [shape: bf16[4,64,32], index: 3, kind: input, shape index: {}]
  %s4 = inlined_call_operand.vmem [shape: f32[1,32], index: 4, kind: input, shape index: {}]
  %s5 = inlined_call_operand.hbm [shape: f32[2,16,32], index: 5, kind: output, shape index: {}]
  %s6 = sld [smem:[#allocation0]]
  $region57: #{patch_embed_forward.1} parent=0
    _
  %s8 = ssub.s32 1, %s6
  %s9 = scalar_select 0, %s8, %s6
  $region1: #{patch_embed_forward.1} parent=0
    #allocation4 [shape = 'u8[16384]{0}', space=vmem, size = 0x4000, scoped, tag = 'output window, operand 0']
    #allocation5 [shape = 's32[2]{0}', space=sflag, size = 0x8, scoped, tag = 'scoped memory for patch_embed_forward.1']
    %10 = vsyncpa [#allocation5], 0
    %s11 = scalar_lea.sflag [#allocation5], 1
    %12 = vsyncpa %s11, 0
    loop: start=0, step=1, limit=10
    $region2: #{patch_embed_forward.1} parent=1 // loop_pre_header
      _
    $region3: #{patch_embed_forward.1} parent=1 // loop_header
      %s14 = sphi 0, %s18
      %p15 = scmp.ge.s32.totalorder %s14, 10
      %s21 = sphi 0, %s33
      %s22 = sphi 0, %s29
      %s23 = sphi 0, %s21
      %s24 = sphi 0, %s22
      %s25 = sphi 0, %s23
      %s26 = sphi 0, %s24
      %s38 = sphi 0, %s40
      %s41 = sphi 0, %s38
      %s42 = sphi 0, %s41
      %s58 = sphi 0, %s42
      %s62 = sphi 0, %s62
      %s64 = sphi 0, %s62
      %s65 = sphi 0, %s64
      %s79 = sphi 0, %s65
      %s83 = sphi 0, %s83
      %s85 = sphi 0, %s83
      %s86 = sphi 0, %s85
      %s100 = sphi 0, %s86
      %s106 = sphi 0, %s108
      %s109 = sphi 0, %s106
      %s110 = sphi 0, %s109
      %s126 = sphi 0, %s110
      %s130 = sphi 0, %s130
      %s132 = sphi 0, %s130
      %s133 = sphi 0, %s132
      %s147 = sphi 0, %s133
      %s153 = sphi 0, %s155
      %s156 = sphi 0, %s153
      %s157 = sphi 0, %s156
      %s173 = sphi 0, %s157
    $region4: #{patch_embed_forward.1} parent=1 // loop_header_branch
      %17 = sbr.rel (%p15) target = $region8
    $region5: #{patch_embed_forward.1} parent=1 // loop_body
      %s19 = ssub.s32 %s14, 1
      %s20 = ssub.s32 %s14, 2
      %s27 = sadd.s32 1, %s22
      %p28 = scmp.ge.s32.totalorder %s27, 4
      %s29 = scalar_select %p28, 0, %s27
      %s30 = sadd.s32 1, %s21
      %s31 = scalar_select %p28, %s30, %s21
      %p32 = scmp.ge.s32.totalorder %s31, 2
      %s33 = scalar_select %p32, 0, %s31
      %s34 = ssub.s32 %s21, %s33
      %s35 = ssub.s32 %s22, %s29
      %s36 = sor.u32 %s34, %s35
      %p37 = scmp.eq.s32.totalorder %s36, 0
      %s39 = sadd.s32 %s38, 1
      %s40 = scalar_select %p37, %s38, %s39
      %p43 = pneg %p37
      %p44 = scmp.eq.s32.totalorder %s14, 7
      %p45 = por %p43, %p44
      %p46 = scmp.ne.s32.totalorder %s38, %s41
      %p47 = scmp.eq.s32.totalorder %s14, 0
      %p48 = por %p46, %p47
      %p49 = scmp.ne.s32.totalorder %s38, %s41
      %p50 = scmp.eq.s32.totalorder %s19, 7
      %p51 = por %p49, %p50
      %p52 = scmp.ne.s32.totalorder %s41, %s42
      %p53 = scmp.eq.s32.totalorder %s19, 0
      %p54 = por %p52, %p53
      %p55 = scmp.ne.s32.totalorder %s41, %s42
      %p56 = scmp.eq.s32.totalorder %s20, 7
      %p57 = por %p55, %p56
      %p59 = scmp.ne.s32.totalorder %s42, %s58
      %p60 = scmp.eq.s32.totalorder %s20, 0
      %p61 = por %p59, %p60
      %s63 = sadd.s32 %s62, 1
      %p66 = scmp.eq.s32.totalorder %s14, 7
      %p67 = scmp.ne.s32.totalorder %s62, %s64
      %p68 = scmp.eq.s32.totalorder %s14, 0
      %p69 = por %p67, %p68
      %p70 = scmp.ne.s32.totalorder %s62, %s64
      %p71 = scmp.eq.s32.totalorder %s19, 7
      %p72 = por %p70, %p71
      %p73 = scmp.ne.s32.totalorder %s64, %s65
      %p74 = scmp.eq.s32.totalorder %s19, 0
      %p75 = por %p73, %p74
      %p76 = scmp.ne.s32.totalorder %s64, %s65
      %p77 = scmp.eq.s32.totalorder %s20, 7
      %p78 = por %p76, %p77
      %p80 = scmp.ne.s32.totalorder %s65, %s79
      %p81 = scmp.eq.s32.totalorder %s20, 0
      %p82 = por %p80, %p81
      %s84 = sadd.s32 %s83, 1
      %p87 = scmp.eq.s32.totalorder %s14, 7
      %p88 = scmp.ne.s32.totalorder %s83, %s85
      %p89 = scmp.eq.s32.totalorder %s14, 0
      %p90 = por %p88, %p89
      %p91 = scmp.ne.s32.totalorder %s83, %s85
      %p92 = scmp.eq.s32.totalorder %s19, 7
      %p93 = por %p91, %p92
      %p94 = scmp.ne.s32.totalorder %s85, %s86
      %p95 = scmp.eq.s32.totalorder %s19, 0
      %p96 = por %p94, %p95
      %p97 = scmp.ne.s32.totalorder %s85, %s86
      %p98 = scmp.eq.s32.totalorder %s20, 7
      %p99 = por %p97, %p98
      %p101 = scmp.ne.s32.totalorder %s86, %s100
      %p102 = scmp.eq.s32.totalorder %s20, 0
      %p103 = por %p101, %p102
      %s104 = ssub.s32 %s22, %s29
      %p105 = scmp.eq.s32.totalorder %s104, 0
      %s107 = sadd.s32 %s106, 1
      %s108 = scalar_select %p105, %s106, %s107
      %p111 = pneg %p105
      %p112 = scmp.eq.s32.totalorder %s14, 7
      %p113 = por %p111, %p112
      %p114 = scmp.ne.s32.totalorder %s106, %s109
      %p115 = scmp.eq.s32.totalorder %s14, 0
      %p116 = por %p114, %p115
      %p117 = scmp.ne.s32.totalorder %s106, %s109
      %p118 = scmp.eq.s32.totalorder %s19, 7
      %p119 = por %p117, %p118
      %p120 = scmp.ne.s32.totalorder %s109, %s110
      %p121 = scmp.eq.s32.totalorder %s19, 0
      %p122 = por %p120, %p121
      %p123 = scmp.ne.s32.totalorder %s109, %s110
      %p124 = scmp.eq.s32.totalorder %s20, 7
      %p125 = por %p123, %p124
      %p127 = scmp.ne.s32.totalorder %s110, %s126
      %p128 = scmp.eq.s32.totalorder %s20, 0
      %p129 = por %p127, %p128
      %s131 = sadd.s32 %s130, 1
      %p134 = scmp.eq.s32.totalorder %s14, 7
      %p135 = scmp.ne.s32.totalorder %s130, %s132
      %p136 = scmp.eq.s32.totalorder %s14, 0
      %p137 = por %p135, %p136
      %p138 = scmp.ne.s32.totalorder %s130, %s132
      %p139 = scmp.eq.s32.totalorder %s19, 7
      %p140 = por %p138, %p139
      %p141 = scmp.ne.s32.totalorder %s132, %s133
      %p142 = scmp.eq.s32.totalorder %s19, 0
      %p143 = por %p141, %p142
      %p144 = scmp.ne.s32.totalorder %s132, %s133
      %p145 = scmp.eq.s32.totalorder %s20, 7
      %p146 = por %p144, %p145
      %p148 = scmp.ne.s32.totalorder %s133, %s147
      %p149 = scmp.eq.s32.totalorder %s20, 0
      %p150 = por %p148, %p149
      %s151 = ssub.s32 %s21, %s33
      %p152 = scmp.eq.s32.totalorder %s151, 0
      %s154 = sadd.s32 %s153, 1
      %s155 = scalar_select %p152, %s153, %s154
      %p158 = pneg %p152
      %p159 = scmp.eq.s32.totalorder %s14, 7
      %p160 = por %p158, %p159
      %p161 = scmp.ne.s32.totalorder %s153, %s156
      %p162 = scmp.eq.s32.totalorder %s14, 0
      %p163 = por %p161, %p162
      %p164 = scmp.ne.s32.totalorder %s153, %s156
      %p165 = scmp.eq.s32.totalorder %s19, 7
      %p166 = por %p164, %p165
      %p167 = scmp.ne.s32.totalorder %s156, %s157
      %p168 = scmp.eq.s32.totalorder %s19, 0
      %p169 = por %p167, %p168
      %p170 = scmp.ne.s32.totalorder %s156, %s157
      %p171 = scmp.eq.s32.totalorder %s20, 7
      %p172 = por %p170, %p171
      %p174 = scmp.ne.s32.totalorder %s157, %s173
      %p175 = scmp.eq.s32.totalorder %s20, 0
      %p176 = por %p174, %p175
      %p177 = scmp.le.s32.totalorder 1, %s14
      %p178 = scmp.lt.s32.totalorder %s14, 9
      %p179 = pnand %p177, %p178
      %p180 = pneg %p179
      // Predicated region
      $region9: #{patch_embed_forward.1} parent=5 // pred_check
        _
      $region10: #{patch_embed_forward.1} parent=5 // pred_check_branch
        %182 = sbr.rel (%p179) target = $region12
      $region11: #{patch_embed_forward.1} parent=5 // pred_region
        %s183 = ssub.s32 %s14, 1
        // Predicated region
        $region13: #{patch_embed_forward.1} parent=11 // pred_check
          %p184 = pneg %p75
        $region14: #{patch_embed_forward.1} parent=11 // pred_check_branch
          %186 = sbr.rel (%p184) target = $region16
        $region15: #{patch_embed_forward.1} parent=11 // pred_region
          _
        $region16: #{patch_embed_forward.1} parent=11 // pred_fallthru
          _
        // Predicated region
        $region17: #{patch_embed_forward.1} parent=11 // pred_check
          %p187 = pneg %p96
        $region18: #{patch_embed_forward.1} parent=11 // pred_check_branch
          %189 = sbr.rel (%p187) target = $region20
        $region19: #{patch_embed_forward.1} parent=11 // pred_region
          _
        $region20: #{patch_embed_forward.1} parent=11 // pred_fallthru
          _
        // Predicated region
        $region21: #{patch_embed_forward.1} parent=11 // pred_check
          %p190 = pneg %p143
        $region22: #{patch_embed_forward.1} parent=11 // pred_check_branch
          %192 = sbr.rel (%p190) target = $region24
        $region23: #{patch_embed_forward.1} parent=11 // pred_region
          _
        $region24: #{patch_embed_forward.1} parent=11 // pred_fallthru
          _
      $region12: #{patch_embed_forward.1} parent=5 // pred_fallthru
        _
      %p193 = scmp.lt.s32.totalorder %s14, 8
      // Predicated region
      $region25: #{patch_embed_forward.1} parent=5 // pred_check
        %p194 = pneg %p193
      $region26: #{patch_embed_forward.1} parent=5 // pred_check_branch
        %196 = sbr.rel (%p194) target = $region28
      $region27: #{patch_embed_forward.1} parent=5 // pred_region
        // Predicated region
        $region29: #{patch_embed_forward.1} parent=27 // pred_check
          %p197 = pneg %p48
        $region30: #{patch_embed_forward.1} parent=27 // pred_check_branch
          %199 = sbr.rel (%p197) target = $region32
        $region31: #{patch_embed_forward.1} parent=27 // pred_region
          %p200 = scmp.lt.s32.totalorder %s21, 1
          %s201 = scalar_select %p200, %s21, 1
          %p202 = scmp.lt.s32.totalorder %s22, 3
          %s203 = scalar_select %p202, %s22, 3
          %s204 = smul.addr %s203, 2
          %s205 = smul.addr %s201, 8
          %s206 = sadd.s32 %s204, %s205
          %s207 = smul.addr %s206, 4
          %s208 = scalar_lea.vmem %s0, %s207
        $region32: #{patch_embed_forward.1} parent=27 // pred_fallthru
          _
        // Predicated region
        $region33: #{patch_embed_forward.1} parent=27 // pred_check
          %p209 = pneg %p116
        $region34: #{patch_embed_forward.1} parent=27 // pred_check_branch
          %211 = sbr.rel (%p209) target = $region36
        $region35: #{patch_embed_forward.1} parent=27 // pred_region
          %p212 = scmp.lt.s32.totalorder %s22, 3
          %s213 = scalar_select %p212, %s22, 3
          %s214 = smul.addr %s213, 8
          %s215 = smul.addr %s214, 4
          %s216 = scalar_lea.vmem %s3, %s215
        $region36: #{patch_embed_forward.1} parent=27 // pred_fallthru
          _
      $region28: #{patch_embed_forward.1} parent=5 // pred_fallthru
        _
      %p217 = scmp.le.s32.totalorder 1, %s14
      %p218 = scmp.lt.s32.totalorder %s14, 9
      %p219 = pnand %p217, %p218
      %p220 = pneg %p219
      // Predicated region
      $region37: #{patch_embed_forward.1} parent=5 // pred_check
        _
      $region38: #{patch_embed_forward.1} parent=5 // pred_check_branch
        %222 = sbr.rel (%p219) target = $region40
      $region39: #{patch_embed_forward.1} parent=5 // pred_region
        %s223 = ssub.s32 %s14, 1
        %p224 = scmp.lt.s32.totalorder %s23, 1
        %s225 = scalar_select %p224, %s23, 1
        %p226 = scmp.lt.s32.totalorder %s24, 3
        %s227 = scalar_select %p226, %s24, 3
        %s228 = smul.addr %s227, 2
        %s229 = smul.addr %s225, 8
        %s230 = sadd.s32 %s228, %s229
        %s231 = smul.addr %s230, 4
        %s232 = scalar_lea.vmem %s0, %s231
        %p233 = pneg %p54
        %p234 = pneg %p51
        %p235 = pneg %p75
        %p236 = pneg %p72
        %p237 = pneg %p96
        %p238 = pneg %p93
        %p239 = scmp.lt.s32.totalorder %s24, 3
        %s240 = scalar_select %p239, %s24, 3
        %s241 = smul.addr %s240, 8
        %s242 = smul.addr %s241, 4
        %s243 = scalar_lea.vmem %s3, %s242
        %p244 = pneg %p122
        %p245 = pneg %p119
        %p246 = pneg %p143
        %p247 = pneg %p140
        %p248 = pneg %p169
        %p249 = pneg %p166
        %s250 = sand.u32 %s156, 1
        %s251 = scalar_lea.sflag [#allocation5], %s250
        %s252 = sand.u32 %s156, 1
        %s253 = smul.addr %s252, 16
        %s254 = scalar_lea.vmem [#allocation4], %s253
        %p255 = scmp.lt.s32.totalorder %s23, 1
        %s256 = scalar_select %p255, %s23, 1
        %p257 = scmp.lt.s32.totalorder %s24, 3
        %s258 = scalar_select %p257, %s24, 3
        %s259 = smul.addr %s258, 2
        %s260 = smul.addr %s256, 8
        %s261 = sadd.s32 %s259, %s260
        %s262 = smul.addr %s261, 4
        %s263 = scalar_lea.vmem %s0, %s262
        %p264 = scmp.lt.s32.totalorder %s24, 3
        %s265 = scalar_select %p264, %s24, 3
        %s266 = smul.addr %s265, 8
        %s267 = smul.addr %s266, 4
        %s268 = scalar_lea.vmem %s3, %s267
        %p272 = scmp.eq.s32.totalorder %s24, 0
        // Predicated region
        $region41: #{patch_embed_forward.1} parent=39 // pred_check
          %p273 = pneg %p272
        $region42: #{patch_embed_forward.1} parent=39 // pred_check_branch
          %275 = sbr.rel (%p273) target = $region44
        $region43: #{patch_embed_forward.1} parent=39 // pred_region
          %vm276 = vcmask 125952
          %277 = vst.msk [vmem:[#allocation2] sm:$0xf] %vm276, 0
          %v278 = vld [vmem:[%s4] sm:$0x1]
          %v280 = vlaneseq
          %v281 = vshrl.u32 %v280, 7
          %v282 = vsub.s32 0, %v281
          %v283 = vrot.slane %v278, %v282
          %vm285 = vcmask 261120
          %286 = vst.msk [vmem:[%s254] sm:$0xff] %vm285, %v283
          %287 = vst.msk [vmem:[%s254 + $0x8] sm:$0xff] %vm285, %v283
        $region44: #{patch_embed_forward.1} parent=39 // pred_fallthru
          _
        %v288 = vld [vmem:[%s263] sm:$0xf]
        %v289 = vld [vmem:[%s263 + $0x4] sm:$0xf]
        %v290 = vld [vmem:[%s1] sm:$0xf]
        %v291 = vld [vmem:[%s1 + $0x4] sm:$0xf]
        %v292 = vld [vmem:[%s1 + $0x8] sm:$0xf]
        %v293 = vld [vmem:[%s1 + $0xc] sm:$0xf]
        %v294 = vld [vmem:[%s1 + $0x10] sm:$0x3]
        %v295 = vld [vmem:[%s2] sm:$0x1]
        %v297 = vlaneseq
        %v298 = vshrl.u32 %v297, 7
        %v299 = vsub.s32 0, %v298
        %v300 = vrot.slane %v295, %v299
        %v304 = vunpack.c.l.b16 %v288
        %v305 = vunpack.c.l.b16 %v289
        %v306 = vpack.c.b16 %v305, %v304
        %v312 = vunpack.c.l.b16 %v290
        %v313 = vunpack.c.l.b16 %v291
        %v314 = vunpack.c.l.b16 %v292
        %v315 = vunpack.c.l.b16 %v293
        %v316 = vunpack.c.l.b16 %v294
        %v317 = vpack.c.b16 %v313, %v312
        %v318 = vpack.c.b16 %v315, %v314
        %v319 = vpack.c.b16 %v316, %v316
        %vm322 = vcmask 293888
        %v324 = vsel %vm322, %v306, 0
        %vm326 = vcmask 1041408
        %v328 = vsel %vm326, %v319, 0
        %330 = vmatprep.subr.bf16.mxu0 0
        %331 = vmatpush1.bf16.msra.mxu0 %v317
        %332 = vmatprep.subr.bf16.mxu0 0
        %333 = vmatpush1.bf16.msra.mxu0 %v318
        %334 = vmatprep.subr.bf16.mxu0 0
        %335 = vmatpush1.bf16.msra.mxu0 %v328
        %336 = vmatprep.subr.bf16.mxu0 0
        %337 = vmatpush1.bf16.msra.mxu0 0
        %338 = vmatprep.subr.bf16.mxu0 0
        %339 = vmatpush1.bf16.msra.mxu0 0
        %340 = vmatprep.subr.bf16.mxu0 0
        %341 = vmatpush1.bf16.msra.mxu0 0
        %342 = vmatprep.subr.bf16.mxu0 0
        %343 = vmatpush1.bf16.msra.mxu0 0
        %344 = vmatprep.subr.bf16.mxu0 0
        %345 = vmatpush1.bf16.msra.mxu0 0
        %346 = vmatprep.subr.bf16.mxu0 0
        %347 = vmatpush1.bf16.msra.mxu0 0
        %348 = vmatprep.subr.bf16.mxu0 0
        %349 = vmatpush1.bf16.msra.mxu0 0
        %350 = vmatprep.subr.bf16.mxu0 0
        %351 = vmatpush1.bf16.msra.mxu0 0
        %352 = vmatprep.subr.bf16.mxu0 0
        %353 = vmatpush1.bf16.msra.mxu0 0
        %354 = vmatprep.subr.bf16.mxu0 0
        %355 = vmatpush1.bf16.msra.mxu0 0
        %356 = vmatprep.subr.bf16.mxu0 0
        %357 = vmatpush1.bf16.msra.mxu0 0
        %358 = vmatprep.subr.bf16.mxu0 0
        %359 = vmatpush1.bf16.msra.mxu0 0
        %360 = vmatprep.subr.bf16.mxu0 0
        %361 = vmatpush1.bf16.msra.mxu0 0
        %362 = vmatprep.mubr.bf16.mxu0 0
        %363 = vmatmul.mubr.bf16.gmra.mrb[0].mxu0 %v324
        %v364 = vpop.f32.mrb[0].mxu0
        %v365 = vadd.f32 %v300, %v364
        %v366 = vpop.f32.mrb[0].mxu0
        %v367 = vpop.f32.mrb[0].mxu0
        %v368 = vadd.f32 %v300, %v367
        %v369 = vpop.f32.mrb[0].mxu0
        %370 = vdwg.mxu0
        %v371 = vmul.f32 %v365, 0.5
        %v372 = vmul.f32 %v368, 0.5
        %v373 = vmul.f32 %v365, 0.044715
        %v374 = vmul.f32 %v368, 0.044715
        %v375 = vmul.f32 %v373, %v365
        %v376 = vmul.f32 %v374, %v368
        %v377 = vmul.f32 %v375, %v365
        %v378 = vmul.f32 %v376, %v368
        %v379 = vadd.f32 %v365, %v377
        %v380 = vadd.f32 %v368, %v378
        %v381 = vmul.f32 %v379, 0.7978846
        %v382 = vmul.f32 %v380, 0.7978846
        %v383 = vtanh.pop %v381
        %v384 = vtanh.pop %v382
        %v385 = vadd.f32 %v383, 1.0
        %v386 = vadd.f32 %v384, 1.0
        %v387 = vmul.f32 %v371, %v385
        %v388 = vmul.f32 %v372, %v386
        %v389 = vpack.c.bf16 %v388, %v387
        %v391 = vunpack.c.l.b16 %v389
        %v392 = vunpack.c.h.b16 %v389
        %v393 = vpack.c.b16 %v391, %v391
        %v394 = vpack.c.b16 %v392, %v392
        %vm397 = vcmask 125952
        %398 = vst.msk [vmem:[#allocation2 + $0x4] sm:$0xf] %vm397, %v393
        %399 = vst.msk [vmem:[#allocation2 + $0x8] sm:$0xf] %vm397, %v394
        %v400 = vlaneseq
        %v401 = vshrl.u32 %v400, 7
        %v402 = vadd.s32 %v401, 8
        %vm403 = vcmp.lt.s32.totalorder %v401, 0
        %v404 = vsub.s32 0, %v401
        %v405 = vsel %vm403, %v404, %v401
        %v406 = vshrl.u32 %v405, 2
        %v407 = vand.u32 %v405, 3
        %v408 = vsub.s32 0, %v407
        %v409 = vsel %vm403, %v408, %v407
        %vm410 = vcmp.lt.s32.totalorder %v402, 0
        %v411 = vsub.s32 0, %v402
        %v412 = vsel %vm410, %v411, %v402
        %v413 = vshrl.u32 %v412, 2
        %v414 = vand.u32 %v412, 3
        %v415 = vsub.s32 0, %v414
        %v416 = vsel %vm410, %v415, %v414
        %vm417 = vcmp.ne.s32.totalorder %v409, 0
        %vm418 = vcmp.ne.s32.totalorder %v416, 0
        %vm419 = vcmp.lt.s32.totalorder %v409, 0
        %vm420 = vcmp.lt.s32.totalorder %v416, 0
        %vm421 = vmand %vm419, %vm417
        %vm422 = vmand %vm420, %vm418
        %v423 = vadd.s32 %v409, 4
        %v424 = vadd.s32 %v416, 4
        %v425 = vsel %vm421, %v423, %v409
        %v426 = vsel %vm422, %v424, %v416
        %vm427 = vcmp.eq.s32.totalorder %v425, 0
        %vm428 = vcmp.eq.s32.totalorder %v426, 0
        %vm429 = vcmask 130048
        %430 = vst.msk [vmem:[#allocation3] sm:$0xff] %vm429, %v389
        %v431 = vld [vmem:[#allocation2] sm:$0x8]
        %v432 = vld [vmem:[#allocation2 + $0x4] sm:$0xf]
        %v433 = vld [vmem:[#allocation2 + $0x8] sm:$0xf]
        %v434 = vsel %vm427, 1, 0
        %v435 = vsel %vm428, 1, 0
        %vm436 = vcmp.eq.s32.totalorder %v434, 1
        %vm437 = vcmp.eq.s32.totalorder %v435, 1
        %vm438 = vmpackc.low %vm436, %vm436
        %vm439 = vmpackc.low %vm437, %vm437
        %v440 = vsel %vm438, 65537, 0
        %v441 = vsel %vm439, 65537, 0
        %vm442 = vsmask.f32 3328
        %vm443 = vsmask.f32 7440
        %vm444 = vmor %vm442, %vm443
        %v446 = vshll.u32 %v440, 16
        %v448 = vrot.slane %v446, 5
        %v449 = vshrl.u32 %v440, 16
        %v451 = vrot.slane %v449, 4
        %v452 = vor.u32 %v451, %v448
        %v453 = vrot.slane %v452, 4
        %v455 = vshll.u32 %v441, 16
        %v457 = vrot.slane %v455, 5
        %v458 = vsel %vm444, %v453, %v457
        %v459 = vshrl.u32 %v441, 16
        %v461 = vrot.slane %v459, 4
        %v462 = vor.u32 %v461, %v457
        %v463 = vrot.slane %v462, 4
        %vm464 = vcmp.ne.s16.totalorder %v448, 0
        %vm465 = vcmp.ne.s16.totalorder %v458, 0
        %vm466 = vcmp.ne.s16.totalorder %v463, 0
        %v467 = vsel %vm464, 0, %v431
        %v468 = vsel %vm465, 0, %v432
        %v469 = vsel %vm466, 0, %v433
        %v473 = vunpack.c.l.b16 %v467
        %v474 = vunpack.c.l.b16 %v468
        %v475 = vunpack.c.l.b16 %v469
        %v476 = vpack.c.b16 %v474, %v473
        %v477 = vpack.c.b16 %v475, %v475
        %vm478 = vsmask.f32 4352
        %v480 = vshrl.u32 %v476, 16
        %v482 = vrot.slane %v480, 3
        %v483 = vshll.u32 %v476, 16
        %v485 = vrot.slane %v483, 4
        %v486 = vor.u32 %v482, %v485
        %v488 = vshrl.u32 %v477, 16
        %v490 = vrot.slane %v488, 3
        %v491 = vshll.u32 %v477, 16
        %v493 = vrot.slane %v491, 4
        %v494 = vor.u32 %v490, %v493
        %v495 = vsel %vm478, %v486, %v494
        %496 = vrot.lane.b32.xlu0 %v495, 16
        %v497 = vpop.permute.xlu0 %496
        %vm499 = vcmask 261248
        %500 = vst.msk [vmem:[#allocation3] sm:$0xff] %vm499, %v497
        %v501 = vld [vmem:[#allocation2] sm:$0xc]
        %v502 = vld [vmem:[#allocation2 + $0x4] sm:$0xf]
        %v503 = vld [vmem:[#allocation2 + $0x8] sm:$0x3]
        %v507 = vunpack.c.l.b16 %v501
        %v508 = vunpack.c.l.b16 %v502
        %v509 = vunpack.c.l.b16 %v503
        %v510 = vpack.c.b16 %v508, %v507
        %v511 = vpack.c.b16 %v509, %v509
        %vm512 = vcmask 1045504
        %v513 = vrot.slane %v510, 2
        %v514 = vrot.slane %v511, 2
        %v515 = vsel %vm512, %v513, %v514
        %516 = vrot.lane.b32.xlu0 %v515, 32
        %v517 = vpop.permute.xlu0 %516
        %vm519 = vcmask 392448
        %520 = vst.msk [vmem:[#allocation3] sm:$0xff] %vm519, %v517
        %v521 = vld [vmem:[#allocation2] sm:$0xe]
        %v522 = vld [vmem:[#allocation2 + $0x4] sm:$0xf]
        %v523 = vld [vmem:[#allocation2 + $0x8] sm:$0x3]
        %vm524 = vsmask.f32 1280
        %vm525 = vsmask.f32 5392
        %vm526 = vmor %vm524, %vm525
        %v527 = vrot.slane %v449, 6
        %v528 = vrot.slane %v446, 7
        %v529 = vor.u32 %v527, %v528
        %v530 = vrot.slane %v529, 4
        %v531 = vrot.slane %v459, 6
        %v532 = vrot.slane %v455, 7
        %v533 = vor.u32 %v531, %v532
        %v534 = vsel %vm526, %v530, %v533
        %v535 = vrot.slane %v533, 4
        %vm536 = vcmp.ne.s16.totalorder %v529, 0
        %vm537 = vcmp.ne.s16.totalorder %v534, 0
        %vm538 = vcmp.ne.s16.totalorder %v535, 0
        %v539 = vsel %vm536, 0, %v521
        %v540 = vsel %vm537, 0, %v522
        %v541 = vsel %vm538, 0, %v523
        %v545 = vunpack.c.l.b16 %v539
        %v546 = vunpack.c.l.b16 %v540
        %v547 = vunpack.c.l.b16 %v541
        %v548 = vpack.c.b16 %v546, %v545
        %v549 = vpack.c.b16 %v547, %v547
        %vm550 = vsmask.f32 6400
        %v552 = vshrl.u32 %v548, 16
        %v554 = vrot.slane %v552, 1
        %v555 = vshll.u32 %v548, 16
        %v557 = vrot.slane %v555, 2
        %v558 = vor.u32 %v554, %v557
        %v560 = vshrl.u32 %v549, 16
        %v562 = vrot.slane %v560, 1
        %v563 = vshll.u32 %v549, 16
        %v565 = vrot.slane %v563, 2
        %v566 = vor.u32 %v562, %v565
        %v567 = vsel %vm550, %v558, %v566
        %568 = vrot.lane.b32.xlu0 %v567, 48
        %v569 = vpop.permute.xlu0 %568
        %vm571 = vcmask 523648
        %572 = vst.msk [vmem:[#allocation3] sm:$0xff] %vm571, %v569
        %v573 = vld [vmem:[%s254] sm:$0xff]
        %v574 = vld [vmem:[%s254 + $0x8] sm:$0xff]
        %v575 = vld [vmem:[#allocation3] sm:$0xff]
        %v576 = vld [vmem:[%s268] sm:$0xf]
        %v577 = vld [vmem:[%s268 + $0x4] sm:$0xf]
        %v578 = vld [vmem:[%s268 + $0x8] sm:$0xf]
        %v579 = vld [vmem:[%s268 + $0xc] sm:$0xf]
        %v580 = vld [vmem:[%s268 + $0x10] sm:$0xf]
        %v581 = vld [vmem:[%s268 + $0x14] sm:$0xf]
        %v582 = vld [vmem:[%s268 + $0x18] sm:$0xf]
        %v583 = vld [vmem:[%s268 + $0x1c] sm:$0xf]
        %v592 = vunpack.c.l.b16 %v576
        %v593 = vunpack.c.l.b16 %v577
        %v594 = vunpack.c.l.b16 %v578
        %v595 = vunpack.c.l.b16 %v579
        %v596 = vunpack.c.l.b16 %v580
        %v597 = vunpack.c.l.b16 %v581
        %v598 = vunpack.c.l.b16 %v582
        %v599 = vunpack.c.l.b16 %v583
        %v600 = vpack.c.b16 %v593, %v592
        %v601 = vpack.c.b16 %v595, %v594
        %v602 = vpack.c.b16 %v597, %v596
        %v603 = vpack.c.b16 %v599, %v598
        %vm608 = vcmask 523264
        %v610 = vsel %vm608, %v575, 0
        %612 = vmatprep.subr.bf16.mxu0 0
        %613 = vmatpush1.bf16.msra.mxu0 %v600
        %614 = vmatprep.subr.bf16.mxu0 0
        %615 = vmatpush1.bf16.msra.mxu0 %v601
        %616 = vmatprep.subr.bf16.mxu0 0
        %617 = vmatpush1.bf16.msra.mxu0 %v602
        %618 = vmatprep.subr.bf16.mxu0 0
        %619 = vmatpush1.bf16.msra.mxu0 %v603
        %620 = vmatprep.subr.bf16.mxu0 0
        %621 = vmatpush1.bf16.msra.mxu0 0
        %622 = vmatprep.subr.bf16.mxu0 0
        %623 = vmatpush1.bf16.msra.mxu0 0
        %624 = vmatprep.subr.bf16.mxu0 0
        %625 = vmatpush1.bf16.msra.mxu0 0
        %626 = vmatprep.subr.bf16.mxu0 0
        %627 = vmatpush1.bf16.msra.mxu0 0
        %628 = vmatprep.subr.bf16.mxu0 0
        %629 = vmatpush1.bf16.msra.mxu0 0
        %630 = vmatprep.subr.bf16.mxu0 0
        %631 = vmatpush1.bf16.msra.mxu0 0
        %632 = vmatprep.subr.bf16.mxu0 0
        %633 = vmatpush1.bf16.msra.mxu0 0
        %634 = vmatprep.subr.bf16.mxu0 0
        %635 = vmatpush1.bf16.msra.mxu0 0
        %636 = vmatprep.subr.bf16.mxu0 0
        %637 = vmatpush1.bf16.msra.mxu0 0
        %638 = vmatprep.subr.bf16.mxu0 0
        %639 = vmatpush1.bf16.msra.mxu0 0
        %640 = vmatprep.subr.bf16.mxu0 0
        %641 = vmatpush1.bf16.msra.mxu0 0
        %642 = vmatprep.subr.bf16.mxu0 0
        %643 = vmatpush1.bf16.msra.mxu0 0
        %644 = vmatprep.mubr.bf16.mxu0 0
        %645 = vmatmul.mubr.bf16.gmra.mrb[0].mxu0 %v610
        %v646 = vpop.f32.mrb[0].mxu0
        %v647 = vadd.f32 0.0, %v646
        %v648 = vpop.f32.mrb[0].mxu0
        %v649 = vpop.f32.mrb[0].mxu0
        %v650 = vadd.f32 0.0, %v649
        %v651 = vpop.f32.mrb[0].mxu0
        %652 = vdwg.mxu0
        %v653 = vadd.f32 %v573, %v647
        %v654 = vadd.f32 %v574, %v650
        %vm655 = vcmask 261120
        %656 = vst.msk [vmem:[%s254] sm:$0xff] %vm655, %v653
        %657 = vst.msk [vmem:[%s254 + $0x8] sm:$0xff] %vm655, %v654
        %s658 = sand.u32 %s156, 1
        %s659 = scalar_lea.sflag [#allocation5], %s658
        %s660 = sand.u32 %s156, 1
        %s661 = smul.addr %s660, 16
        %s662 = scalar_lea.vmem [#allocation4], %s661
        // Predicated region
        $region45: #{patch_embed_forward.1} parent=39 // pred_check
          %p663 = pneg %p166
        $region46: #{patch_embed_forward.1} parent=39 // pred_check_branch
          %665 = sbr.rel (%p663) target = $region48
        $region47: #{patch_embed_forward.1} parent=39 // pred_region
          %s667 = ssub.s32 256, 256
          %668 = vsyncadd %s659, %s667
          %s669 = smul.addr %s23, 2
          %s670 = smul.addr %s669, 128
          %s671 = scalar_lea.hbm %s5, %s670
          %s672 = sshll.u32 %s662, 4
          %s673 = int_to_ptr.vmem [resolvable:$true] %s672
          %678 = dma.vmem_to_hbm [thread:$0]  %s673, 256, %s671, %s659, 128, 128, 8
        $region48: #{patch_embed_forward.1} parent=39 // pred_fallthru
          _
      $region40: #{patch_embed_forward.1} parent=5 // pred_fallthru
        _
      %p679 = scmp.le.s32.totalorder 2, %s14
      // Predicated region
      $region49: #{patch_embed_forward.1} parent=5 // pred_check
        %p680 = pneg %p679
      $region50: #{patch_embed_forward.1} parent=5 // pred_check_branch
        %682 = sbr.rel (%p680) target = $region52
      $region51: #{patch_embed_forward.1} parent=5 // pred_region
        %s683 = ssub.s32 %s14, 2
        // Predicated region
        $region53: #{patch_embed_forward.1} parent=51 // pred_check
          %p684 = pneg %p172
        $region54: #{patch_embed_forward.1} parent=51 // pred_check_branch
          %686 = sbr.rel (%p684) target = $region56
        $region55: #{patch_embed_forward.1} parent=51 // pred_region
          %s687 = sand.u32 %s157, 1
          %s688 = scalar_lea.sflag [#allocation5], %s687
          %s689 = sand.u32 %s157, 1
          %s690 = smul.addr %s689, 16
          %s691 = scalar_lea.vmem [#allocation4], %s690
          %692 = dma.done %s688, 256
        $region56: #{patch_embed_forward.1} parent=51 // pred_fallthru
          _
      $region52: #{patch_embed_forward.1} parent=5 // pred_fallthru
        _
    $region6: #{patch_embed_forward.1} parent=1 // loop_footer
      %s18 = sadd.s32 1, %s14
    $region7: #{patch_embed_forward.1} parent=1 // loop_footer_branch
      %13 = sbr.rel target = $region3
    $region8: #{patch_embed_forward.1} parent=1 // loop_exit
      _
    %693 = vsyncpa [#allocation5], 1
    %s694 = scalar_lea.sflag [#allocation5], 1
    %695 = vsyncpa %s694, 1

</llo_original>
